<compile_context>
chip_gen: v5e
topology: v5e:2x2
jax: 0.10.0
libtpu: 0.0.40
codegen_flags: <defaults>
</compile_context>

<pallas_src>
import functools
import math

import jax
import jax.numpy as jnp
import numpy as np
from jax import lax
from jax.experimental import pallas as pl
from jax.experimental.pallas import tpu as pltpu


def _adain_norm_mod_kernel(x_ref, scale_ref, bias_ref, out_ref, *, eps):
    # x_ref:     (RB, HW)  rows = flattened (n, c) pairs, lanes = flattened spatial
    # scale_ref: (RB, 1)   per-row style scale (WSLinear output, precomputed)
    # bias_ref:  (RB, 1)   per-row style bias
    # out_ref:   (RB, HW)
    x = x_ref[...].astype(jnp.float32)
    inv_hw = jnp.float32(1.0 / x.shape[-1])

    # One-pass statistics (biased variance, matching nn.InstanceNorm2d).
    s1 = jnp.sum(x, axis=-1, keepdims=True) * inv_hw            # E[x]      (RB, 1)
    s2 = jnp.sum(x * x, axis=-1, keepdims=True) * inv_hw        # E[x^2]    (RB, 1)
    var = jnp.maximum(s2 - s1 * s1, 0.0)
    inv_std = lax.rsqrt(var + eps)                              # EUP slot

    gain = scale_ref[...].astype(jnp.float32) * inv_std         # (RB, 1)
    shift = bias_ref[...].astype(jnp.float32) - gain * s1       # (RB, 1)
    out_ref[...] = (gain * x + shift).astype(out_ref.dtype)     # 1 mul + 1 add / pixel


def adain_pallas(x, w, params, *, eps=1e-5):
    """x: (N, C, H, W), w: (N, w_dim). params holds the two WSLinear weights/biases."""
    N, C, H, W = x.shape
    w_dim = w.shape[1]
    HW = H * W
    rows = N * C

    # --- WSLinear style projections, hoisted to the wrapper (tiny matmuls; review rec.) ---
    ws_mul = jnp.float32(math.sqrt(2.0 / w_dim))
    w_scaled = w.astype(jnp.float32) * ws_mul
    style_scale = w_scaled @ params["scale_w"].astype(jnp.float32).T + params["scale_b"]
    style_bias = w_scaled @ params["bias_w"].astype(jnp.float32).T + params["bias_b"]

    # --- Lane-dense / sublane-dense layout: (N*C, H*W) ---
    x_flat = x.reshape(rows, HW)
    scale_col = style_scale.reshape(rows, 1).astype(jnp.float32)
    bias_col = style_bias.reshape(rows, 1).astype(jnp.float32)

    # --- Row-block selection: multiple of 8, ~4 MiB per x block, >=2 steps when possible ---
    itemsize = jnp.dtype(x.dtype).itemsize
    target_block_bytes = 4 * 1024 * 1024
    rb = (target_block_bytes // (HW * itemsize)) // 8 * 8
    rb = int(max(8, min(rb, ((rows + 7) // 8) * 8)))
    if pl.cdiv(rows, rb) < 2 and rows > 8:        # prefer >=2 grid steps (v7x megacore)
        rb = int(max(8, (rb // 2) // 8 * 8))
    num_blocks = int(pl.cdiv(rows, rb))
    rows_padded = num_blocks * rb

    if rows_padded != rows:
        pad = rows_padded - rows
        x_flat = jnp.pad(x_flat, ((0, pad), (0, 0)))
        scale_col = jnp.pad(scale_col, ((0, pad), (0, 0)))
        bias_col = jnp.pad(bias_col, ((0, pad), (0, 0)))

    kernel = functools.partial(_adain_norm_mod_kernel, eps=eps)

    out_flat = pl.pallas_call(
        kernel,
        out_shape=jax.ShapeDtypeStruct((rows_padded, HW), x.dtype),
        grid_spec=pltpu.PrefetchScalarGridSpec(
            num_scalar_prefetch=0,
            grid=(num_blocks,),
            in_specs=[
                pl.BlockSpec((rb, HW), lambda i: (i, 0)),   # x rows
                pl.BlockSpec((rb, 1), lambda i: (i, 0)),    # style scale column
                pl.BlockSpec((rb, 1), lambda i: (i, 0)),    # style bias column
            ],
            out_specs=pl.BlockSpec((rb, HW), lambda i: (i, 0)),
        ),
        compiler_params=pltpu.CompilerParams(
            dimension_semantics=("parallel",),
            vmem_limit_bytes=32 * 1024 * 1024,
        ),
    )(x_flat, scale_col, bias_col)

    return out_flat[:rows].reshape(N, C, H, W)


def _reference(x, w, params):
    """Pure-JAX reference mirroring the PyTorch AdaIN forward."""
    w_dim = w.shape[1]
    eps = 1e-5
    mean = x.mean(axis=(2, 3), keepdims=True)
    var = ((x - mean) ** 2).mean(axis=(2, 3), keepdims=True)   # biased, as InstanceNorm2d
    x_norm = (x - mean) / jnp.sqrt(var + eps)

    ws_mul = np.sqrt(2.0 / w_dim)
    style_scale = (w * ws_mul) @ params["scale_w"].T + params["scale_b"]   # (N, C)
    style_bias = (w * ws_mul) @ params["bias_w"].T + params["bias_b"]      # (N, C)
    return style_scale[:, :, None, None] * x_norm + style_bias[:, :, None, None]


if __name__ == "__main__":
    # Small shapes consistent with the module: batch=2, channels=4, spatial=16x16, w_dim=32.
    N, C, H, W, W_DIM = 2, 4, 16, 16, 32

    key = jax.random.PRNGKey(0)
    ks = jax.random.split(key, 6)

    # WSLinear init is normal weights / zero bias; use random biases too so the bias path
    # is actually exercised (forward semantics are independent of init).
    params = {
        "scale_w": jax.random.normal(ks[0], (C, W_DIM), jnp.float32),
        "scale_b": 0.1 * jax.random.normal(ks[1], (C,), jnp.float32),
        "bias_w": jax.random.normal(ks[2], (C, W_DIM), jnp.float32),
        "bias_b": 0.1 * jax.random.normal(ks[3], (C,), jnp.float32),
    }

    x = jax.random.normal(ks[4], (N, C, H, W), jnp.float32)
    w = jax.random.normal(ks[5], (N, W_DIM), jnp.float32)

    out = adain_pallas(x, w, params)
    out = jax.block_until_ready(out)

    ref = _reference(x, w, params)
    np.testing.assert_allclose(np.asarray(out), np.asarray(ref), rtol=1e-4, atol=1e-4)

    print("KERNEL_OK")
</pallas_src>

<mosaic_0001>
module attributes {stable_mosaic.version = 11 : i64} {
  func.func @_adain_norm_mod_kernel(%arg0: i32, %arg1: memref<8x256xf32, #tpu.memory_space<vmem>>, %arg2: memref<8x1xf32, #tpu.memory_space<vmem>>, %arg3: memref<8x1xf32, #tpu.memory_space<vmem>>, %arg4: memref<8x256xf32, #tpu.memory_space<vmem>>) attributes {dimension_semantics = [#tpu.dimension_semantics<parallel>], iteration_bounds = array<i64: 1>, scalar_prefetch = 0 : i64, scratch_operands = 0 : i64, tpu.core_type = #tpu.core_type<tc>, window_params = [{transform_indices = @transform_0, window_bounds = array<i64: 8, 256>}, {transform_indices = @transform_1, window_bounds = array<i64: 8, 1>}, {transform_indices = @transform_2, window_bounds = array<i64: 8, 1>}, {transform_indices = @transform_3, window_bounds = array<i64: 8, 256>}]} {
    %c0 = arith.constant 0 : index
    %c0_0 = arith.constant 0 : index
    %0 = vector.load %arg1[%c0, %c0_0] : memref<8x256xf32, #tpu.memory_space<vmem>>, vector<8x256xf32>
    %cst = arith.constant dense<0.000000e+00> : vector<8xf32>
    %1 = vector.multi_reduction <add>, %0, %cst [1] : vector<8x256xf32> to vector<8xf32>
    %2 = vector.shape_cast %1 : vector<8xf32> to vector<8x1xf32>
    %cst_1 = arith.constant 3.906250e-03 : f32
    %3 = vector.broadcast %cst_1 : f32 to vector<8x1xf32>
    %4 = arith.mulf %2, %3 : vector<8x1xf32>
    %5 = arith.mulf %0, %0 : vector<8x256xf32>
    %cst_2 = arith.constant dense<0.000000e+00> : vector<8xf32>
    %6 = vector.multi_reduction <add>, %5, %cst_2 [1] : vector<8x256xf32> to vector<8xf32>
    %7 = vector.shape_cast %6 : vector<8xf32> to vector<8x1xf32>
    %cst_3 = arith.constant 3.906250e-03 : f32
    %8 = vector.broadcast %cst_3 : f32 to vector<8x1xf32>
    %9 = arith.mulf %7, %8 : vector<8x1xf32>
    %10 = arith.mulf %4, %4 : vector<8x1xf32>
    %11 = arith.subf %9, %10 : vector<8x1xf32>
    %cst_4 = arith.constant 0.000000e+00 : f32
    %12 = vector.broadcast %cst_4 : f32 to vector<8x1xf32>
    %13 = arith.maximumf %11, %12 : vector<8x1xf32>
    %cst_5 = arith.constant 9.99999974E-6 : f32
    %14 = vector.broadcast %cst_5 : f32 to vector<8x1xf32>
    %15 = arith.addf %13, %14 : vector<8x1xf32>
    %16 = math.rsqrt %15 : vector<8x1xf32>
    %c0_6 = arith.constant 0 : index
    %c0_7 = arith.constant 0 : index
    %17 = vector.load %arg2[%c0_6, %c0_7] : memref<8x1xf32, #tpu.memory_space<vmem>>, vector<8x1xf32>
    %18 = arith.mulf %17, %16 : vector<8x1xf32>
    %c0_8 = arith.constant 0 : index
    %c0_9 = arith.constant 0 : index
    %19 = vector.load %arg3[%c0_8, %c0_9] : memref<8x1xf32, #tpu.memory_space<vmem>>, vector<8x1xf32>
    %20 = arith.mulf %18, %4 : vector<8x1xf32>
    %21 = arith.subf %19, %20 : vector<8x1xf32>
    %22 = vector.broadcast %18 : vector<8x1xf32> to vector<8x256xf32>
    %23 = arith.mulf %22, %0 : vector<8x256xf32>
    %24 = vector.broadcast %21 : vector<8x1xf32> to vector<8x256xf32>
    %25 = arith.addf %23, %24 : vector<8x256xf32>
    %c0_10 = arith.constant 0 : index
    %c0_11 = arith.constant 0 : index
    %26 = vector.load %arg4[%c0_10, %c0_11] : memref<8x256xf32, #tpu.memory_space<vmem>>, vector<8x256xf32>
    tpu.vector_store %arg4[%c0_10, %c0_11], %25 {strides = array<i32>} : memref<8x256xf32, #tpu.memory_space<vmem>>, vector<8x256xf32>,
    return
  }
  func.func @transform_0(%arg0: i32) -> (i32, i32) {
    %c0_i32 = arith.constant 0 : i32
    %c0_i32_0 = arith.constant 0 : i32
    return %arg0, %c0_i32 : i32, i32
  }
  func.func @transform_1(%arg0: i32) -> (i32, i32) {
    %c0_i32 = arith.constant 0 : i32
    %c0_i32_0 = arith.constant 0 : i32
    return %arg0, %c0_i32 : i32, i32
  }
  func.func @transform_2(%arg0: i32) -> (i32, i32) {
    %c0_i32 = arith.constant 0 : i32
    %c0_i32_0 = arith.constant 0 : i32
    return %arg0, %c0_i32 : i32, i32
  }
  func.func @transform_3(%arg0: i32) -> (i32, i32) {
    %c0_i32 = arith.constant 0 : i32
    %c0_i32_0 = arith.constant 0 : i32
    return %arg0, %c0_i32 : i32, i32
  }
}

</mosaic_0001>

<llo_original>
// kernel: tpu_custom_call.1
$region0: #{tpu_custom_call.1}
  #allocation0 [shape = 'u32[]', space=smem, size = 0x4, offset = 0x4, fixed_abs, tag = 'smem constant byte address 0x4 - core index']
  #allocation1 [shape = 'u32[72,128]{1,0:T(1,128)}', space=vmem, size = 0x9000, scoped, tag = 'internal scratch']
  %s0 = inlined_call_operand.vmem [shape: f32[8,256], index: 0, kind: input, shape index: {}]
  %s1 = inlined_call_operand.vmem [shape: f32[8,1], index: 1, kind: input, shape index: {}]
  %s2 = inlined_call_operand.vmem [shape: f32[8,1], index: 2, kind: input, shape index: {}]
  %s3 = inlined_call_operand.hbm [shape: f32[8,256], index: 3, kind: output, shape index: {}]
  %s4 = sld [smem:[#allocation0]]
  $region22: #{tpu_custom_call.1} parent=0
    _
  %s6 = ssub.s32 1, %s4
  %s7 = scalar_select 0, %s6, %s4
  $region1: #{tpu_custom_call.1} parent=0
    #allocation2 [shape = 'u8[8192]{0}', space=vmem, size = 0x2000, scoped, tag = 'output window, operand 0, single buffered']
    #allocation3 [shape = 's32[1]{0}', space=sflag, size = 0x4, scoped, tag = 'scoped memory for tpu_custom_call.1']
    %8 = vsyncpa [#allocation3], 0
    // Predicated region
    $region2: #{tpu_custom_call.1} parent=1 // pred_check
      _
    $region3: #{tpu_custom_call.1} parent=1 // pred_check_branch
      %10 = sbr.rel (0) target = $region5
    $region4: #{tpu_custom_call.1} parent=1 // pred_region
      _
    $region5: #{tpu_custom_call.1} parent=1 // pred_fallthru
      _
    // Predicated region
    $region6: #{tpu_custom_call.1} parent=1 // pred_check
      _
    $region7: #{tpu_custom_call.1} parent=1 // pred_check_branch
      %12 = sbr.rel (0) target = $region9
    $region8: #{tpu_custom_call.1} parent=1 // pred_region
      _
    $region9: #{tpu_custom_call.1} parent=1 // pred_fallthru
      _
    // Predicated region
    $region10: #{tpu_custom_call.1} parent=1 // pred_check
      _
    $region11: #{tpu_custom_call.1} parent=1 // pred_check_branch
      %14 = sbr.rel (0) target = $region13
    $region12: #{tpu_custom_call.1} parent=1 // pred_region
      _
    $region13: #{tpu_custom_call.1} parent=1 // pred_fallthru
      _
    %v15 = vld [vmem:[%s0] sm:$0xff]
    %v16 = vld [vmem:[%s0 + $0x8] sm:$0xff]
    %v17 = vadd.f32 %v15, %v16
    %18 = vadd.xlane.f32.xlu0 %v17
    %v19 = vpop.xlane.xlu0 %18
    %v20 = vmul.f32 %v19, 0.00390625
    %v21 = vmul.f32 %v15, %v15
    %v22 = vmul.f32 %v16, %v16
    %v23 = vadd.f32 %v21, %v22
    %24 = vadd.xlane.f32.xlu0 %v23
    %v25 = vpop.xlane.xlu0 %24
    %v26 = vmul.f32 %v25, 0.00390625
    %v27 = vmul.f32 %v20, %v20
    %v28 = vsub.f32 %v26, %v27
    %v29 = vmax.f32 %v28, 0.0
    %v30 = vadd.f32 %v29, 1e-05
    %v31 = vrsqrt.pop %v30
    %v32 = vmul.f32 %v31, %v30
    %v33 = vmul.f32 %v32, %v31
    %v34 = vmul.f32 0.5, %v33
    %v35 = vsub.f32 1.5, %v34
    %v36 = vmul.f32 %v31, %v35
    %vm37 = vweird.f32 %v30
    %vm38 = vweird.f32 %v31
    %vm39 = vmor %vm37, %vm38
    %v40 = vsel %vm39, %v31, %v36
    %v41 = vld [vmem:[%s1] sm:$0xff]
    %v42 = vmul.f32 %v41, %v40
    %v43 = vld [vmem:[%s2] sm:$0xff]
    %v44 = vmul.f32 %v42, %v20
    %v45 = vsub.f32 %v43, %v44
    %47 = vset.pattern.permute.xlu0 0
    %48 = vperm.xlu0 %47, %v42
    %v49 = vpop.permute.xlu0 %48
    %v51 = vmul.f32 %v49, %v15
    %v52 = vmul.f32 %v49, %v16
    %54 = vset.pattern.permute.xlu0 0
    %55 = vperm.xlu0 %54, %v45
    %v56 = vpop.permute.xlu0 %55
    %v58 = vadd.f32 %v51, %v56
    %v59 = vadd.f32 %v52, %v56
    %60 = vst [vmem:[#allocation2] sm:$0xff] %v58
    %61 = vst [vmem:[#allocation2 + $0x8] sm:$0xff] %v59
    // Predicated region
    $region14: #{tpu_custom_call.1} parent=1 // pred_check
      _
    $region15: #{tpu_custom_call.1} parent=1 // pred_check_branch
      %63 = sbr.rel (0) target = $region17
    $region16: #{tpu_custom_call.1} parent=1 // pred_region
      %65 = vsyncadd [#allocation3], 0
      %s67 = sshll.u32 [#allocation2], 4
      %s68 = int_to_ptr.vmem [resolvable:$true] %s67
      %s69 = sshll.u32 %s3, 4
      %s70 = int_to_ptr.hbm [resolvable:$true] %s69
      %72 = dma.vmem_to_hbm [thread:$0]  %s68, 256, %s70, [#allocation3]
    $region17: #{tpu_custom_call.1} parent=1 // pred_fallthru
      _
    // Predicated region
    $region18: #{tpu_custom_call.1} parent=1 // pred_check
      _
    $region19: #{tpu_custom_call.1} parent=1 // pred_check_branch
      %74 = sbr.rel (0) target = $region21
    $region20: #{tpu_custom_call.1} parent=1 // pred_region
      %76 = dma.done [#allocation3], 256
    $region21: #{tpu_custom_call.1} parent=1 // pred_fallthru
      _
    %77 = vsyncpa [#allocation3], 1

</llo_original>
